<compile_context>
chip_gen: v5e
topology: v5e:2x2
jax: 0.10.0
libtpu: 0.0.40
codegen_flags: <defaults>
</compile_context>

<pallas_src>
import functools

import jax
import jax.numpy as jnp
from jax import lax
from jax.experimental import pallas as pl
from jax.experimental.pallas import tpu as pltpu

_SUB = 8      # sublane tile
_LANE = 128   # lane tile


def _thrreg_kernel(x_ref, o_ref, acc_ref, *, tiles_per_core, valid_rows,
                   needs_mask):
    """grid = (cores, tiles_per_core); axis 1 is the sequential reduction.

    x_ref  : (tm, 128) VMEM tile of the flattened input
    o_ref  : (1, 1)    SMEM per-core partial-sum output
    acc_ref: (8, 128)  VMEM f32 vector accumulator (persists across axis 1)
    """
    i = pl.program_id(1)

    @pl.when(i == 0)
    def _init():
        acc_ref[...] = jnp.zeros_like(acc_ref)

    x = x_ref[...].astype(jnp.float32)              # (tm, 128)
    val = 2.0 * x * (1.0 - x)                       # == 1 - (x^2 + (x-1)^2)

    tm = x_ref.shape[0]
    if needs_mask:
        # Mask rows beyond the real array (partial last tile and any tile the
        # index_map clamped back in-bounds); contributions become exactly 0.
        # Cheap VPU filler — fully hidden under the tile DMA.
        blk = pl.program_id(0) * tiles_per_core + i
        row0 = blk * tm
        ridx = row0 + lax.broadcasted_iota(jnp.int32, x.shape, 0)
        val = jnp.where(ridx < valid_rows, val, 0.0)

    # Pure-VPU partial reduction into the (8, 128) accumulator.
    acc_ref[...] += val.reshape(tm // _SUB, _SUB, _LANE).sum(axis=0)

    @pl.when(i == tiles_per_core - 1)
    def _finalize():
        # Single cross-lane/sublane (XLU) reduce per core, only at the end.
        o_ref[0, 0] = jnp.sum(acc_ref[...])


def thrreg_loss(pred, *, tile_rows: int = 4096, num_cores: int = 2):
    """mean(1 - (pred^2 + (pred - 1)^2)) via a Pallas TPU reduction kernel."""
    x = jnp.asarray(pred).reshape(-1)
    n = int(x.shape[0])

    block_elems = _SUB * _LANE                      # 1024
    rem = n % block_elems
    if rem:
        # Fallback for non-aligned sizes: zero-pad < 1024 elements.
        # Zero padding contributes exactly 0 (2*0*(1-0) = 0) to the sum.
        x = jnp.pad(x, (0, block_elems - rem))
    rows = x.shape[0] // _LANE                      # multiple of 8
    x2d = x.reshape(rows, _LANE)                    # free bitcast when rem==0

    # Tile selection: big tiles (2 MiB f32) so DMA dominates the ~0.35 µs
    # per-step overhead; always a multiple of 8 rows for the (8,128) rule.
    tm = min(tile_rows, rows)
    tiles_total = -(-rows // tm)
    cores = max(1, min(num_cores, tiles_total))
    tiles_per_core = -(-tiles_total // cores)
    needs_mask = (cores * tiles_per_core * tm) != rows
    last_blk = tiles_total - 1

    def x_index_map(c, i):
        # Clamp so a core's (intended) out-of-range tile re-reads the last
        # valid tile; the kernel masks its contribution to zero.
        return (jnp.minimum(c * tiles_per_core + i, last_blk), 0)

    kernel = functools.partial(
        _thrreg_kernel,
        tiles_per_core=tiles_per_core,
        valid_rows=rows,
        needs_mask=needs_mask,
    )

    partials = pl.pallas_call(
        kernel,
        out_shape=jax.ShapeDtypeStruct((cores, 1), jnp.float32),
        grid_spec=pltpu.PrefetchScalarGridSpec(
            num_scalar_prefetch=0,
            grid=(cores, tiles_per_core),
            in_specs=[pl.BlockSpec((tm, _LANE), x_index_map)],
            out_specs=pl.BlockSpec(
                (1, 1), lambda c, i: (c, 0), memory_space=pltpu.SMEM),
            scratch_shapes=[pltpu.VMEM((_SUB, _LANE), jnp.float32)],
        ),
        compiler_params=pltpu.CompilerParams(
            dimension_semantics=("parallel", "arbitrary")),
        cost_estimate=pl.CostEstimate(
            flops=4 * n, transcendentals=0, bytes_accessed=4 * n + 4 * cores),
    )(x2d)

    # Combine per-core partial sums and apply the mean over the ORIGINAL n.
    return jnp.sum(partials) * jnp.float32(1.0 / n)


def thrreg_loss_ref(pred):
    """Pure-JAX reference matching the PyTorch forward."""
    p = jnp.asarray(pred, dtype=jnp.float32)
    return jnp.mean(1.0 - ((p - 0.0) ** 2 + (p - 1.0) ** 2))


if __name__ == "__main__":
    key = jax.random.PRNGKey(0)

    # Small shape consistent with the module's typical use (a prediction map).
    pred = jax.random.uniform(key, (2, 4, 16, 16), dtype=jnp.float32)
    out = jax.block_until_ready(thrreg_loss(pred))
    ref = thrreg_loss_ref(pred)
    assert jnp.allclose(out, ref, atol=1e-5, rtol=1e-5), (out, ref)

    # Moderate shape: single large tile path (DMA-amortized default tiling).
    key2 = jax.random.fold_in(key, 1)
    pred2 = jax.random.uniform(key2, (2, 4, 192, 200), dtype=jnp.float32)
    out2 = jax.block_until_ready(thrreg_loss(pred2))
    ref2 = thrreg_loss_ref(pred2)
    assert jnp.allclose(out2, ref2, atol=1e-5, rtol=1e-5), (out2, ref2)

    # Force the multi-core / multi-tile / masked-tail path explicitly, plus a
    # non-lane-aligned size exercising the small-pad fallback.
    key3 = jax.random.fold_in(key, 2)
    pred3 = jax.random.uniform(key3, (3, 5, 97, 33), dtype=jnp.float32)
    out3 = jax.block_until_ready(
        thrreg_loss(pred3, tile_rows=64, num_cores=2))
    ref3 = thrreg_loss_ref(pred3)
    assert jnp.allclose(out3, ref3, atol=1e-5, rtol=1e-5), (out3, ref3)

    print("KERNEL_OK")
</pallas_src>

<mosaic_0001>
module attributes {stable_mosaic.version = 11 : i64} {
  func.func @_thrreg_kernel(%arg0: i32, %arg1: i32, %arg2: memref<16x128xf32, #tpu.memory_space<vmem>>, %arg3: memref<1x1xf32, #tpu.memory_space<smem>>, %arg4: memref<8x128xf32, #tpu.memory_space<vmem>>) attributes {dimension_semantics = [#tpu.dimension_semantics<parallel>, #tpu.dimension_semantics<arbitrary>], iteration_bounds = array<i64: 1, 1>, scalar_prefetch = 0 : i64, scratch_operands = 1 : i64, tpu.core_type = #tpu.core_type<tc>, window_params = [{transform_indices = @transform_0, window_bounds = array<i64: 16, 128>}, {transform_indices = @transform_1, window_bounds = array<i64: 1, 1>}]} {
    %c0_i32 = arith.constant 0 : i32
    %0 = arith.cmpi eq, %arg1, %c0_i32 : i32
    %1 = arith.extui %0 : i1 to i32
    %c0_i32_0 = arith.constant 0 : i32
    %2 = arith.cmpi ne, %1, %c0_i32_0 : i32
    scf.if %2 {
      %cst_10 = arith.constant 0.000000e+00 : f32
      %17 = vector.broadcast %cst_10 : f32 to vector<8x128xf32>
      %c0_11 = arith.constant 0 : index
      %c0_12 = arith.constant 0 : index
      %18 = vector.load %arg4[%c0_11, %c0_12] : memref<8x128xf32, #tpu.memory_space<vmem>>, vector<8x128xf32>
      tpu.vector_store %arg4[%c0_11, %c0_12], %17 {strides = array<i32>} : memref<8x128xf32, #tpu.memory_space<vmem>>, vector<8x128xf32>,
    } else {
    }
    %c0 = arith.constant 0 : index
    %c0_1 = arith.constant 0 : index
    %3 = vector.load %arg2[%c0, %c0_1] : memref<16x128xf32, #tpu.memory_space<vmem>>, vector<16x128xf32>
    %cst = arith.constant 2.000000e+00 : f32
    %4 = vector.broadcast %cst : f32 to vector<16x128xf32>
    %5 = arith.mulf %4, %3 : vector<16x128xf32>
    %cst_2 = arith.constant 1.000000e+00 : f32
    %6 = vector.broadcast %cst_2 : f32 to vector<16x128xf32>
    %7 = arith.subf %6, %3 : vector<16x128xf32>
    %8 = arith.mulf %5, %7 : vector<16x128xf32>
    %c0_3 = arith.constant 0 : index
    %c0_4 = arith.constant 0 : index
    %9 = vector.load %arg4[%c0_3, %c0_4] : memref<8x128xf32, #tpu.memory_space<vmem>>, vector<8x128xf32>
    %10 = vector.shape_cast %8 : vector<16x128xf32> to vector<2x8x128xf32>
    %cst_5 = arith.constant dense<0.000000e+00> : vector<8x128xf32>
    %11 = vector.multi_reduction <add>, %10, %cst_5 [0] : vector<2x8x128xf32> to vector<8x128xf32>
    %12 = arith.addf %9, %11 : vector<8x128xf32>
    %c0_6 = arith.constant 0 : index
    %c0_7 = arith.constant 0 : index
    %13 = vector.load %arg4[%c0_6, %c0_7] : memref<8x128xf32, #tpu.memory_space<vmem>>, vector<8x128xf32>
    tpu.vector_store %arg4[%c0_6, %c0_7], %12 {strides = array<i32>} : memref<8x128xf32, #tpu.memory_space<vmem>>, vector<8x128xf32>,
    %c0_i32_8 = arith.constant 0 : i32
    %14 = arith.cmpi eq, %arg1, %c0_i32_8 : i32
    %15 = arith.extui %14 : i1 to i32
    %c0_i32_9 = arith.constant 0 : i32
    %16 = arith.cmpi ne, %15, %c0_i32_9 : i32
    scf.if %16 {
      %c0_10 = arith.constant 0 : index
      %c0_11 = arith.constant 0 : index
      %17 = vector.load %arg4[%c0_10, %c0_11] : memref<8x128xf32, #tpu.memory_space<vmem>>, vector<8x128xf32>
      %18 = vector.shape_cast %17 : vector<8x128xf32> to vector<1x8x128xf32>
      %cst_12 = arith.constant dense<0.000000e+00> : vector<1xf32>
      %19 = vector.multi_reduction <add>, %18, %cst_12 [1, 2] : vector<1x8x128xf32> to vector<1xf32>
      %20 = vector.shape_cast %19 : vector<1xf32> to vector<1x1x1xf32>
      %21 = vector.extract %20[0, 0, 0] : f32 from vector<1x1x1xf32>
      %c0_13 = arith.constant 0 : index
      %c0_14 = arith.constant 0 : index
      %22 = memref.load %arg3[%c0_13, %c0_14] : memref<1x1xf32, #tpu.memory_space<smem>>
      memref.store %21, %arg3[%c0_13, %c0_14] : memref<1x1xf32, #tpu.memory_space<smem>>
    } else {
    }
    return
  }
  func.func @transform_0(%arg0: i32, %arg1: i32) -> (i32, i32) {
    %c1_i32 = arith.constant 1 : i32
    %0 = arith.muli %arg0, %c1_i32 : i32
    %1 = arith.addi %0, %arg1 : i32
    %c0_i32 = arith.constant 0 : i32
    %2 = arith.minsi %1, %c0_i32 : i32
    %c0_i32_0 = arith.constant 0 : i32
    %c0_i32_1 = arith.constant 0 : i32
    return %2, %c0_i32_0 : i32, i32
  }
  func.func @transform_1(%arg0: i32, %arg1: i32) -> (i32, i32) {
    %c0_i32 = arith.constant 0 : i32
    %c0_i32_0 = arith.constant 0 : i32
    return %arg0, %c0_i32 : i32, i32
  }
}

</mosaic_0001>

<llo_original>
// kernel: tpu_custom_call.1
$region0: #{tpu_custom_call.1}
  #allocation0 [shape = 'u32[]', space=smem, size = 0x4, offset = 0x4, fixed_abs, tag = 'smem constant byte address 0x4 - core index']
  #allocation1 [shape = 'u32[72,128]{1,0:T(1,128)}', space=vmem, size = 0x9000, scoped, tag = 'internal scratch']
  #allocation2 [shape = 'f32[8,128]{1,0:T(8,128)}', space=vmem, size = 0x1000, scoped, tag = 'scratch operand']
  %s0 = inlined_call_operand.hbm [shape: f32[16,128], index: 0, kind: input, shape index: {}]
  %s1 = inlined_call_operand.hbm [shape: f32[1,1], index: 1, kind: output, shape index: {}]
  %s2 = sld [smem:[#allocation0]]
  $region26: #{tpu_custom_call.1} parent=0
    _
  %s4 = ssub.s32 1, %s2
  %s5 = scalar_select 0, %s4, %s2
  $region1: #{tpu_custom_call.1} parent=0
    #allocation3 [shape = 'u8[8192]{0}', space=vmem, size = 0x2000, scoped, tag = 'input window, operand 0, single buffered']
    #allocation4 [shape = 's32[1]{0}', space=sflag, size = 0x4, scoped, tag = 'scoped memory for tpu_custom_call.1']
    #allocation5 [shape = 's32[1]{0}', space=sflag, size = 0x4, scoped, tag = 'scoped memory for tpu_custom_call.1']
    #allocation6 [shape = 'u8[512]{0}', space=smem, size = 0x200, scoped, tag = 'output window, operand 0, single buffered']
    %6 = vsyncpa [#allocation4], 0
    %7 = vsyncpa [#allocation5], 0
    // Predicated region
    $region2: #{tpu_custom_call.1} parent=1 // pred_check
      _
    $region3: #{tpu_custom_call.1} parent=1 // pred_check_branch
      %9 = sbr.rel (0) target = $region5
    $region4: #{tpu_custom_call.1} parent=1 // pred_region
      %s10 = sadd.s32 0, 0
      %p11 = scmp.lt.s32.totalorder %s10, 0
      %s12 = scalar_select %p11, %s10, 0
      %s13 = smul.u32 2, %s12
      %15 = vsyncadd [#allocation4], 0
      %s16 = smul.addr %s13, 8
      %s17 = scalar_lea.hbm %s0, %s16
      %s18 = sshll.u32 %s17, 4
      %s19 = int_to_ptr.hbm [resolvable:$true] %s18
      %s20 = sshll.u32 [#allocation3], 4
      %s21 = int_to_ptr.vmem [resolvable:$true] %s20
      %26 = dma.hbm_to_vmem [thread:$0]  %s19, 256, %s21, [#allocation4], 128, 128, 8
    $region5: #{tpu_custom_call.1} parent=1 // pred_fallthru
      _
    // Predicated region
    $region6: #{tpu_custom_call.1} parent=1 // pred_check
      _
    $region7: #{tpu_custom_call.1} parent=1 // pred_check_branch
      %28 = sbr.rel (0) target = $region9
    $region8: #{tpu_custom_call.1} parent=1 // pred_region
      %30 = dma.done [#allocation4], 256
    $region9: #{tpu_custom_call.1} parent=1 // pred_fallthru
      _
    %s31 = sadd.s32 0, 0
    %p32 = scmp.lt.s32.totalorder %s31, 0
    %s33 = scalar_select %p32, %s31, 0
    %s34 = smul.u32 2, %s33
    %p35 = scmp.eq.s32.totalorder 0, 0
    // Predicated region
    $region10: #{tpu_custom_call.1} parent=1 // pred_check
      %p36 = pneg %p35
    $region11: #{tpu_custom_call.1} parent=1 // pred_check_branch
      %38 = sbr.rel (%p36) target = $region13
    $region12: #{tpu_custom_call.1} parent=1 // pred_region
      %39 = vst [vmem:[#allocation2] sm:$0xff] 0.0
    $region13: #{tpu_custom_call.1} parent=1 // pred_fallthru
      _
    %v40 = vld [vmem:[#allocation3] sm:$0xff]
    %v41 = vld [vmem:[#allocation3 + $0x8] sm:$0xff]
    %v42 = vmul.f32 %v40, 2.0
    %v43 = vmul.f32 %v41, 2.0
    %v44 = vsub.f32 1.0, %v40
    %v45 = vsub.f32 1.0, %v41
    %v46 = vmul.f32 %v42, %v44
    %v47 = vmul.f32 %v43, %v45
    %v48 = vld [vmem:[#allocation2] sm:$0xff]
    %v49 = vadd.f32 %v46, %v47
    %v50 = vadd.f32 %v48, %v49
    %51 = vst [vmem:[#allocation2] sm:$0xff] %v50
    // Predicated region
    $region14: #{tpu_custom_call.1} parent=1 // pred_check
      %p52 = pneg %p35
    $region15: #{tpu_custom_call.1} parent=1 // pred_check_branch
      %54 = sbr.rel (%p52) target = $region17
    $region16: #{tpu_custom_call.1} parent=1 // pred_region
      %v55 = vld [vmem:[#allocation2] sm:$0xff]
      %56 = vadd.xlane.f32.xlu0 %v55
      %v57 = vpop.xlane.xlu0 %56
      %v58 = vrot.slane %v57, 4
      %v59 = vadd.f32 %v57, %v58
      %v60 = vrot.slane %v59, 2
      %v61 = vadd.f32 %v59, %v60
      %v62 = vrot.slane %v61, 1
      %v63 = vadd.f32 %v61, %v62
      %s64 = vtos %v63
      %s65 = scalar_lea.smem [#allocation6], 0
      %66 = sst [smem:[%s65]] %s64
    $region17: #{tpu_custom_call.1} parent=1 // pred_fallthru
      _
    // Predicated region
    $region18: #{tpu_custom_call.1} parent=1 // pred_check
      _
    $region19: #{tpu_custom_call.1} parent=1 // pred_check_branch
      %68 = sbr.rel (0) target = $region21
    $region20: #{tpu_custom_call.1} parent=1 // pred_region
      %70 = vsyncadd [#allocation5], 0
      %s72 = sshll.u32 %s1, 4
      %s73 = int_to_ptr.hbm [resolvable:$true] %s72
      %75 = dma.smem_to_hbm [#allocation6], 16, %s73, [#allocation5]
    $region21: #{tpu_custom_call.1} parent=1 // pred_fallthru
      _
    // Predicated region
    $region22: #{tpu_custom_call.1} parent=1 // pred_check
      _
    $region23: #{tpu_custom_call.1} parent=1 // pred_check_branch
      %77 = sbr.rel (0) target = $region25
    $region24: #{tpu_custom_call.1} parent=1 // pred_region
      %79 = dma.done [#allocation5], 16
    $region25: #{tpu_custom_call.1} parent=1 // pred_fallthru
      _
    %80 = sfence
    %81 = vsyncpa [#allocation4], 1
    %82 = vsyncpa [#allocation5], 1

</llo_original>
